<compile_context>
chip_gen: v7x
topology: tpu7x:2x2x1
jax: 0.10.0
libtpu: 0.0.40
codegen_flags: <defaults>
</compile_context>

<pallas_src>
import functools

import jax
import jax.numpy as jnp
from jax.experimental import pallas as pl
from jax.experimental.pallas import tpu as pltpu


def _round_up(v, m):
    return (v + m - 1) // m * m


def _pick_co_tile(co_pad):
    if co_pad <= 256:
        return co_pad
    for t in (256, 128):
        if co_pad % t == 0:
            return t
    return co_pad


def _conv3x3_kernel(*refs, n_src, taps, cin_blk, lk_pad, negval):
    """One (image, Cout-tile) block of a 3x3 conv via im2col + one wide-K matmul.

    refs = (w_ref, x_refs..., o_ref, col_ref)
      w_ref   : VMEM (co_tile, 9*cin_blk)  bf16, tap-major weights (resident)
      x_refs  : VMEM (1, cin_blk, Lin)     bf16 flattened padded canvas(es)
      o_ref   : VMEM (1, co_tile, lk_pad)  output canvas (lane/sublane dense)
      col_ref : VMEM (9*cin_blk, lk_pad)   bf16 im2col scratch
    """
    w_ref = refs[0]
    x_refs = refs[1:1 + n_src]
    o_ref = refs[1 + n_src]
    col_ref = refs[2 + n_src]

    # Gather the 9 taps once into the im2col scratch.  Lane realignment
    # (window starts are not 128-aligned) is paid here only; the scratch rows
    # are 16-aligned so every store is unmasked.
    for t, (src, d) in enumerate(taps):
        col_ref[pl.ds(t * cin_blk, cin_blk), :] = x_refs[src][0, :, pl.ds(d, lk_pad)]

    # One wide-K MXU matmul: (co_tile, 9*cin_blk) @ (9*cin_blk, lk_pad), f32 acc.
    acc = jnp.dot(w_ref[...], col_ref[...], preferred_element_type=jnp.float32)
    if negval is not None:                       # fused LeakyReLU in f32
        acc = jnp.where(acc >= 0, acc, negval * acc)
    o_ref[0] = acc.astype(o_ref.dtype)


def conv3x3(x, weight, *, stride, negval=None, out_dtype=None):
    """3x3 conv, padding=1, bias=False, stride in {1, 2}; optional fused LeakyReLU."""
    assert stride in (1, 2)
    N, Cin, H, W = x.shape
    Cout = weight.shape[0]
    if out_dtype is None:
        out_dtype = x.dtype
    Hp, Wp = H + 2, W + 2
    Hout = (H - 1) // stride + 1
    Wout = (W - 1) // stride + 1

    cin_blk = _round_up(Cin, 16)     # 16-row aligned bf16 scratch blocks
    co_pad = _round_up(Cout, 16)     # sublane-dense output stores
    lk = Hout * Wp                   # row-decimated output canvas (lanes)
    lk_pad = _round_up(lk, 128)      # lane-dense output stores

    # ---- layout plumbing (XLA, fuses into one pass): zero-pad spatially,
    # ---- pad channels to cin_blk, cast to bf16, flatten rows onto lanes.
    xp = jnp.pad(x, ((0, 0), (0, cin_blk - Cin), (1, 1), (1, 1))).astype(jnp.bfloat16)
    if stride == 1:
        planes = [xp.reshape(N, cin_blk, Hp * Wp)]
        bases, src_of_kh = [0, Wp, 2 * Wp], [0, 0, 0]
        max_d = 2 * Wp + 2
    else:
        # Even/odd padded rows: output row oh needs padded rows 2oh, 2oh+1, 2oh+2,
        # which become contiguous windows of these two flattened planes.
        planes = [xp[:, :, 0::2, :].reshape(N, cin_blk, -1),    # even padded rows
                  xp[:, :, 1::2, :].reshape(N, cin_blk, -1)]    # odd padded rows
        bases, src_of_kh = [0, 0, Wp], [0, 1, 0]
        max_d = Wp + 2
    lin = _round_up(max_d + lk_pad, 128)
    planes = [jnp.pad(p, ((0, 0), (0, 0), (0, lin - p.shape[-1]))) for p in planes]
    n_src = len(planes)
    taps = tuple((src_of_kh[kh], bases[kh] + kw)
                 for kh in range(3) for kw in range(3))

    # Tap-major weights: w2[o, (kh*3+kw)*cin_blk + i] = weight[o, i, kh, kw].
    w2 = jnp.transpose(weight, (0, 2, 3, 1))
    w2 = jnp.pad(w2, ((0, co_pad - Cout), (0, 0), (0, 0), (0, cin_blk - Cin)))
    w2 = w2.reshape(co_pad, 9 * cin_blk).astype(jnp.bfloat16)

    co_tile = _pick_co_tile(co_pad)
    n_co = co_pad // co_tile

    # VMEM budget from the actual (double-buffered) block sizes, not a fixed cap.
    out_size = jnp.dtype(out_dtype).itemsize
    vmem_need = (2 * co_tile * _round_up(9 * cin_blk, 128) * 2     # weights
                 + 2 * n_src * cin_blk * lin * 2                   # inputs
                 + 2 * co_tile * lk_pad * out_size                 # output
                 + 9 * cin_blk * lk_pad * 2)                       # im2col scratch
    vmem_limit = int(min(max(2 * vmem_need, 32 << 20), 64 << 20))

    kernel = functools.partial(_conv3x3_kernel, n_src=n_src, taps=taps,
                               cin_blk=cin_blk, lk_pad=lk_pad, negval=negval)

    canvas = pl.pallas_call(
        kernel,
        out_shape=jax.ShapeDtypeStruct((N, co_pad, lk_pad), out_dtype),
        grid_spec=pltpu.PrefetchScalarGridSpec(
            num_scalar_prefetch=0,
            grid=(n_co, N),   # weight block resident across the inner batch axis
            in_specs=[pl.BlockSpec((co_tile, 9 * cin_blk), lambda c, b: (c, 0))]
                     + [pl.BlockSpec((1, cin_blk, lin), lambda c, b: (b, 0, 0))
                        for _ in range(n_src)],
            out_specs=pl.BlockSpec((1, co_tile, lk_pad), lambda c, b: (b, c, 0)),
            scratch_shapes=[pltpu.VMEM((9 * cin_blk, lk_pad), jnp.bfloat16)],
        ),
        compiler_params=pltpu.CompilerParams(
            dimension_semantics=("parallel", "parallel"),
            vmem_limit_bytes=vmem_limit,
        ),
    )(w2, *planes)

    # Valid outputs live at canvas[oh, stride*ow]; cheap slice + reshape in XLA.
    out = canvas[:, :Cout, :lk].reshape(N, Cout, Hout, Wp)
    return out[:, :, :, 0:stride * Wout:stride]


def down_block(x, weights, *, negval):
    """DownBlock.forward: log2(scale) x (stride-2 conv + LeakyReLU), then a stride-1 conv."""
    h = x
    for w in weights[:-1]:
        h = conv3x3(h, w, stride=2, negval=negval, out_dtype=jnp.bfloat16)
    return conv3x3(h, weights[-1], stride=1, negval=None, out_dtype=x.dtype)


def down_block_ref(x, weights, *, negval):
    """Pure-JAX f32 reference mirroring the PyTorch module."""
    dn = ("NCHW", "OIHW", "NCHW")
    h = x
    for w in weights[:-1]:
        h = jax.lax.conv_general_dilated(
            h, w, (2, 2), ((1, 1), (1, 1)), dimension_numbers=dn,
            precision=jax.lax.Precision.HIGHEST)
        h = jnp.where(h >= 0, h, negval * h)
    return jax.lax.conv_general_dilated(
        h, weights[-1], (1, 1), ((1, 1), (1, 1)), dimension_numbers=dn,
        precision=jax.lax.Precision.HIGHEST)


if __name__ == "__main__":
    key = jax.random.PRNGKey(0)
    kx, k1, k2 = jax.random.split(key, 3)

    # opt.n_colors=3, opt.n_feats=16, opt.negval=0.2, scale=2 -> one down step.
    N, in_ch, nfeat, out_ch, H, W = 2, 3, 16, 3, 16, 16
    negval = 0.2

    def bf16_exact(a):
        # bf16-representable test data: the MXU consumes bf16, so this keeps the
        # only kernel-vs-reference difference at the bf16 intermediate storage.
        return a.astype(jnp.bfloat16).astype(jnp.float32)

    x = bf16_exact(jax.random.normal(kx, (N, in_ch, H, W), jnp.float32))
    w_down = bf16_exact(0.1 * jax.random.normal(k1, (nfeat, in_ch, 3, 3), jnp.float32))
    w_tail = bf16_exact(0.1 * jax.random.normal(k2, (out_ch, nfeat, 3, 3), jnp.float32))
    weights = [w_down, w_tail]          # scale=2: one stride-2 block + final conv

    fwd = jax.jit(lambda xx, ws: down_block(xx, ws, negval=negval))
    out = jax.block_until_ready(fwd(x, weights))

    ref = down_block_ref(x, weights, negval=negval)
    assert out.shape == (N, out_ch, H // 2, W // 2), out.shape
    # bf16 intermediate activations (vs. f32 HIGHEST reference) -> loose tolerance.
    assert jnp.allclose(out, ref, atol=2e-2, rtol=2e-2), \
        float(jnp.max(jnp.abs(out - ref)))

    print("KERNEL_OK")
</pallas_src>

<mosaic_0001>
module attributes {stable_mosaic.version = 11 : i64} {
  func.func @_conv3x3_kernel(%arg0: i32, %arg1: i32, %arg2: memref<16x144xbf16, #tpu.memory_space<vmem>>, %arg3: memref<1x16x384xbf16, #tpu.memory_space<vmem>>, %arg4: memref<1x16x384xbf16, #tpu.memory_space<vmem>>, %arg5: memref<1x16x256xbf16, #tpu.memory_space<vmem>>, %arg6: memref<144x256xbf16, #tpu.memory_space<vmem>>) attributes {dimension_semantics = [#tpu.dimension_semantics<parallel>, #tpu.dimension_semantics<parallel>], iteration_bounds = array<i64: 1, 2>, scalar_prefetch = 0 : i64, scratch_operands = 1 : i64, tpu.core_type = #tpu.core_type<tc>, window_params = [{transform_indices = @transform_0, window_bounds = array<i64: 16, 144>}, {transform_indices = @transform_1, window_bounds = array<i64: 1, 16, 384>}, {transform_indices = @transform_2, window_bounds = array<i64: 1, 16, 384>}, {transform_indices = @transform_3, window_bounds = array<i64: 1, 16, 256>}]} {
    %c0 = arith.constant 0 : index
    %c0_0 = arith.constant 0 : index
    %c0_1 = arith.constant 0 : index
    %0 = vector.load %arg3[%c0, %c0_0, %c0_1] : memref<1x16x384xbf16, #tpu.memory_space<vmem>>, vector<1x16x256xbf16>
    %1 = vector.shape_cast %0 : vector<1x16x256xbf16> to vector<16x256xbf16>
    %c0_2 = arith.constant 0 : index
    %c0_3 = arith.constant 0 : index
    %2 = vector.load %arg6[%c0_2, %c0_3] : memref<144x256xbf16, #tpu.memory_space<vmem>>, vector<16x256xbf16>
    tpu.vector_store %arg6[%c0_2, %c0_3], %1 {strides = array<i32>} : memref<144x256xbf16, #tpu.memory_space<vmem>>, vector<16x256xbf16>,
    %c0_4 = arith.constant 0 : index
    %c0_5 = arith.constant 0 : index
    %c1 = arith.constant 1 : index
    %3 = vector.load %arg3[%c0_4, %c0_5, %c1] : memref<1x16x384xbf16, #tpu.memory_space<vmem>>, vector<1x16x256xbf16>
    %4 = vector.shape_cast %3 : vector<1x16x256xbf16> to vector<16x256xbf16>
    %c16 = arith.constant 16 : index
    %c0_6 = arith.constant 0 : index
    %5 = vector.load %arg6[%c16, %c0_6] : memref<144x256xbf16, #tpu.memory_space<vmem>>, vector<16x256xbf16>
    tpu.vector_store %arg6[%c16, %c0_6], %4 {strides = array<i32>} : memref<144x256xbf16, #tpu.memory_space<vmem>>, vector<16x256xbf16>,
    %c0_7 = arith.constant 0 : index
    %c0_8 = arith.constant 0 : index
    %c2 = arith.constant 2 : index
    %6 = vector.load %arg3[%c0_7, %c0_8, %c2] : memref<1x16x384xbf16, #tpu.memory_space<vmem>>, vector<1x16x256xbf16>
    %7 = vector.shape_cast %6 : vector<1x16x256xbf16> to vector<16x256xbf16>
    %c32 = arith.constant 32 : index
    %c0_9 = arith.constant 0 : index
    %8 = vector.load %arg6[%c32, %c0_9] : memref<144x256xbf16, #tpu.memory_space<vmem>>, vector<16x256xbf16>
    tpu.vector_store %arg6[%c32, %c0_9], %7 {strides = array<i32>} : memref<144x256xbf16, #tpu.memory_space<vmem>>, vector<16x256xbf16>,
    %c0_10 = arith.constant 0 : index
    %c0_11 = arith.constant 0 : index
    %c0_12 = arith.constant 0 : index
    %9 = vector.load %arg4[%c0_10, %c0_11, %c0_12] : memref<1x16x384xbf16, #tpu.memory_space<vmem>>, vector<1x16x256xbf16>
    %10 = vector.shape_cast %9 : vector<1x16x256xbf16> to vector<16x256xbf16>
    %c48 = arith.constant 48 : index
    %c0_13 = arith.constant 0 : index
    %11 = vector.load %arg6[%c48, %c0_13] : memref<144x256xbf16, #tpu.memory_space<vmem>>, vector<16x256xbf16>
    tpu.vector_store %arg6[%c48, %c0_13], %10 {strides = array<i32>} : memref<144x256xbf16, #tpu.memory_space<vmem>>, vector<16x256xbf16>,
    %c0_14 = arith.constant 0 : index
    %c0_15 = arith.constant 0 : index
    %c1_16 = arith.constant 1 : index
    %12 = vector.load %arg4[%c0_14, %c0_15, %c1_16] : memref<1x16x384xbf16, #tpu.memory_space<vmem>>, vector<1x16x256xbf16>
    %13 = vector.shape_cast %12 : vector<1x16x256xbf16> to vector<16x256xbf16>
    %c64 = arith.constant 64 : index
    %c0_17 = arith.constant 0 : index
    %14 = vector.load %arg6[%c64, %c0_17] : memref<144x256xbf16, #tpu.memory_space<vmem>>, vector<16x256xbf16>
    tpu.vector_store %arg6[%c64, %c0_17], %13 {strides = array<i32>} : memref<144x256xbf16, #tpu.memory_space<vmem>>, vector<16x256xbf16>,
    %c0_18 = arith.constant 0 : index
    %c0_19 = arith.constant 0 : index
    %c2_20 = arith.constant 2 : index
    %15 = vector.load %arg4[%c0_18, %c0_19, %c2_20] : memref<1x16x384xbf16, #tpu.memory_space<vmem>>, vector<1x16x256xbf16>
    %16 = vector.shape_cast %15 : vector<1x16x256xbf16> to vector<16x256xbf16>
    %c80 = arith.constant 80 : index
    %c0_21 = arith.constant 0 : index
    %17 = vector.load %arg6[%c80, %c0_21] : memref<144x256xbf16, #tpu.memory_space<vmem>>, vector<16x256xbf16>
    tpu.vector_store %arg6[%c80, %c0_21], %16 {strides = array<i32>} : memref<144x256xbf16, #tpu.memory_space<vmem>>, vector<16x256xbf16>,
    %c0_22 = arith.constant 0 : index
    %c0_23 = arith.constant 0 : index
    %c18 = arith.constant 18 : index
    %18 = vector.load %arg3[%c0_22, %c0_23, %c18] : memref<1x16x384xbf16, #tpu.memory_space<vmem>>, vector<1x16x256xbf16>
    %19 = vector.shape_cast %18 : vector<1x16x256xbf16> to vector<16x256xbf16>
    %c96 = arith.constant 96 : index
    %c0_24 = arith.constant 0 : index
    %20 = vector.load %arg6[%c96, %c0_24] : memref<144x256xbf16, #tpu.memory_space<vmem>>, vector<16x256xbf16>
    tpu.vector_store %arg6[%c96, %c0_24], %19 {strides = array<i32>} : memref<144x256xbf16, #tpu.memory_space<vmem>>, vector<16x256xbf16>,
    %c0_25 = arith.constant 0 : index
    %c0_26 = arith.constant 0 : index
    %c19 = arith.constant 19 : index
    %21 = vector.load %arg3[%c0_25, %c0_26, %c19] : memref<1x16x384xbf16, #tpu.memory_space<vmem>>, vector<1x16x256xbf16>
    %22 = vector.shape_cast %21 : vector<1x16x256xbf16> to vector<16x256xbf16>
    %c112 = arith.constant 112 : index
    %c0_27 = arith.constant 0 : index
    %23 = vector.load %arg6[%c112, %c0_27] : memref<144x256xbf16, #tpu.memory_space<vmem>>, vector<16x256xbf16>
    tpu.vector_store %arg6[%c112, %c0_27], %22 {strides = array<i32>} : memref<144x256xbf16, #tpu.memory_space<vmem>>, vector<16x256xbf16>,
    %c0_28 = arith.constant 0 : index
    %c0_29 = arith.constant 0 : index
    %c20 = arith.constant 20 : index
    %24 = vector.load %arg3[%c0_28, %c0_29, %c20] : memref<1x16x384xbf16, #tpu.memory_space<vmem>>, vector<1x16x256xbf16>
    %25 = vector.shape_cast %24 : vector<1x16x256xbf16> to vector<16x256xbf16>
    %c128 = arith.constant 128 : index
    %c0_30 = arith.constant 0 : index
    %26 = vector.load %arg6[%c128, %c0_30] : memref<144x256xbf16, #tpu.memory_space<vmem>>, vector<16x256xbf16>
    tpu.vector_store %arg6[%c128, %c0_30], %25 {strides = array<i32>} : memref<144x256xbf16, #tpu.memory_space<vmem>>, vector<16x256xbf16>,
    %c0_31 = arith.constant 0 : index
    %c0_32 = arith.constant 0 : index
    %27 = vector.load %arg2[%c0_31, %c0_32] : memref<16x144xbf16, #tpu.memory_space<vmem>>, vector<16x144xbf16>
    %c0_33 = arith.constant 0 : index
    %c0_34 = arith.constant 0 : index
    %28 = vector.load %arg6[%c0_33, %c0_34] : memref<144x256xbf16, #tpu.memory_space<vmem>>, vector<144x256xbf16>
    %cst = arith.constant dense<0.000000e+00> : vector<16x256xf32>
    %29 = tpu.matmul %27, %28, %cst {dimension_numbers = #tpu.dot_dimension_numbers<[1], [0], [0], [1], [0, 0, 1, 1], [], []>} : vector<16x144xbf16>, vector<144x256xbf16>, vector<16x256xf32> -> vector<16x256xf32>
    %cst_35 = arith.constant 0.000000e+00 : f32
    %30 = vector.broadcast %cst_35 : f32 to vector<16x256xf32>
    %31 = arith.cmpf oge, %29, %30 : vector<16x256xf32>
    %cst_36 = arith.constant 2.000000e-01 : f32
    %32 = vector.broadcast %cst_36 : f32 to vector<16x256xf32>
    %33 = arith.mulf %32, %29 : vector<16x256xf32>
    %34 = arith.select %31, %29, %33 : vector<16x256xi1>, vector<16x256xf32>
    %35 = arith.truncf %34 : vector<16x256xf32> to vector<16x256xbf16>
    %c0_37 = arith.constant 0 : index
    %c0_38 = arith.constant 0 : index
    %c0_39 = arith.constant 0 : index
    %36 = vector.load %arg5[%c0_37, %c0_38, %c0_39] : memref<1x16x256xbf16, #tpu.memory_space<vmem>>, vector<1x16x256xbf16>
    %37 = vector.shape_cast %36 : vector<1x16x256xbf16> to vector<16x256xbf16>
    %38 = vector.shape_cast %35 : vector<16x256xbf16> to vector<1x16x256xbf16>
    tpu.vector_store %arg5[%c0_37, %c0_38, %c0_39], %38 {strides = array<i32>} : memref<1x16x256xbf16, #tpu.memory_space<vmem>>, vector<1x16x256xbf16>,
    return
  }
  func.func @transform_0(%arg0: i32, %arg1: i32) -> (i32, i32) {
    %c0_i32 = arith.constant 0 : i32
    %c0_i32_0 = arith.constant 0 : i32
    return %arg0, %c0_i32 : i32, i32
  }
  func.func @transform_1(%arg0: i32, %arg1: i32) -> (i32, i32, i32) {
    %c0_i32 = arith.constant 0 : i32
    %c0_i32_0 = arith.constant 0 : i32
    %c0_i32_1 = arith.constant 0 : i32
    return %arg1, %c0_i32, %c0_i32_0 : i32, i32, i32
  }
  func.func @transform_2(%arg0: i32, %arg1: i32) -> (i32, i32, i32) {
    %c0_i32 = arith.constant 0 : i32
    %c0_i32_0 = arith.constant 0 : i32
    %c0_i32_1 = arith.constant 0 : i32
    return %arg1, %c0_i32, %c0_i32_0 : i32, i32, i32
  }
  func.func @transform_3(%arg0: i32, %arg1: i32) -> (i32, i32, i32) {
    %c0_i32 = arith.constant 0 : i32
    %c0_i32_0 = arith.constant 0 : i32
    return %arg1, %arg0, %c0_i32 : i32, i32, i32
  }
}

module attributes {stable_mosaic.version = 11 : i64} {
  func.func @_conv3x3_kernel(%arg0: i32, %arg1: i32, %arg2: memref<16x144xbf16, #tpu.memory_space<vmem>>, %arg3: memref<1x16x256xbf16, #tpu.memory_space<vmem>>, %arg4: memref<1x16x128xf32, #tpu.memory_space<vmem>>, %arg5: memref<144x128xbf16, #tpu.memory_space<vmem>>) attributes {dimension_semantics = [#tpu.dimension_semantics<parallel>, #tpu.dimension_semantics<parallel>], iteration_bounds = array<i64: 1, 2>, scalar_prefetch = 0 : i64, scratch_operands = 1 : i64, tpu.core_type = #tpu.core_type<tc>, window_params = [{transform_indices = @transform_0, window_bounds = array<i64: 16, 144>}, {transform_indices = @transform_1, window_bounds = array<i64: 1, 16, 256>}, {transform_indices = @transform_2, window_bounds = array<i64: 1, 16, 128>}]} {
    %c0 = arith.constant 0 : index
    %c0_0 = arith.constant 0 : index
    %c0_1 = arith.constant 0 : index
    %0 = vector.load %arg3[%c0, %c0_0, %c0_1] : memref<1x16x256xbf16, #tpu.memory_space<vmem>>, vector<1x16x128xbf16>
    %1 = vector.shape_cast %0 : vector<1x16x128xbf16> to vector<16x128xbf16>
    %c0_2 = arith.constant 0 : index
    %c0_3 = arith.constant 0 : index
    %2 = vector.load %arg5[%c0_2, %c0_3] : memref<144x128xbf16, #tpu.memory_space<vmem>>, vector<16x128xbf16>
    tpu.vector_store %arg5[%c0_2, %c0_3], %1 {strides = array<i32>} : memref<144x128xbf16, #tpu.memory_space<vmem>>, vector<16x128xbf16>,
    %c0_4 = arith.constant 0 : index
    %c0_5 = arith.constant 0 : index
    %c1 = arith.constant 1 : index
    %3 = vector.load %arg3[%c0_4, %c0_5, %c1] : memref<1x16x256xbf16, #tpu.memory_space<vmem>>, vector<1x16x128xbf16>
    %4 = vector.shape_cast %3 : vector<1x16x128xbf16> to vector<16x128xbf16>
    %c16 = arith.constant 16 : index
    %c0_6 = arith.constant 0 : index
    %5 = vector.load %arg5[%c16, %c0_6] : memref<144x128xbf16, #tpu.memory_space<vmem>>, vector<16x128xbf16>
    tpu.vector_store %arg5[%c16, %c0_6], %4 {strides = array<i32>} : memref<144x128xbf16, #tpu.memory_space<vmem>>, vector<16x128xbf16>,
    %c0_7 = arith.constant 0 : index
    %c0_8 = arith.constant 0 : index
    %c2 = arith.constant 2 : index
    %6 = vector.load %arg3[%c0_7, %c0_8, %c2] : memref<1x16x256xbf16, #tpu.memory_space<vmem>>, vector<1x16x128xbf16>
    %7 = vector.shape_cast %6 : vector<1x16x128xbf16> to vector<16x128xbf16>
    %c32 = arith.constant 32 : index
    %c0_9 = arith.constant 0 : index
    %8 = vector.load %arg5[%c32, %c0_9] : memref<144x128xbf16, #tpu.memory_space<vmem>>, vector<16x128xbf16>
    tpu.vector_store %arg5[%c32, %c0_9], %7 {strides = array<i32>} : memref<144x128xbf16, #tpu.memory_space<vmem>>, vector<16x128xbf16>,
    %c0_10 = arith.constant 0 : index
    %c0_11 = arith.constant 0 : index
    %c10 = arith.constant 10 : index
    %9 = vector.load %arg3[%c0_10, %c0_11, %c10] : memref<1x16x256xbf16, #tpu.memory_space<vmem>>, vector<1x16x128xbf16>
    %10 = vector.shape_cast %9 : vector<1x16x128xbf16> to vector<16x128xbf16>
    %c48 = arith.constant 48 : index
    %c0_12 = arith.constant 0 : index
    %11 = vector.load %arg5[%c48, %c0_12] : memref<144x128xbf16, #tpu.memory_space<vmem>>, vector<16x128xbf16>
    tpu.vector_store %arg5[%c48, %c0_12], %10 {strides = array<i32>} : memref<144x128xbf16, #tpu.memory_space<vmem>>, vector<16x128xbf16>,
    %c0_13 = arith.constant 0 : index
    %c0_14 = arith.constant 0 : index
    %c11 = arith.constant 11 : index
    %12 = vector.load %arg3[%c0_13, %c0_14, %c11] : memref<1x16x256xbf16, #tpu.memory_space<vmem>>, vector<1x16x128xbf16>
    %13 = vector.shape_cast %12 : vector<1x16x128xbf16> to vector<16x128xbf16>
    %c64 = arith.constant 64 : index
    %c0_15 = arith.constant 0 : index
    %14 = vector.load %arg5[%c64, %c0_15] : memref<144x128xbf16, #tpu.memory_space<vmem>>, vector<16x128xbf16>
    tpu.vector_store %arg5[%c64, %c0_15], %13 {strides = array<i32>} : memref<144x128xbf16, #tpu.memory_space<vmem>>, vector<16x128xbf16>,
    %c0_16 = arith.constant 0 : index
    %c0_17 = arith.constant 0 : index
    %c12 = arith.constant 12 : index
    %15 = vector.load %arg3[%c0_16, %c0_17, %c12] : memref<1x16x256xbf16, #tpu.memory_space<vmem>>, vector<1x16x128xbf16>
    %16 = vector.shape_cast %15 : vector<1x16x128xbf16> to vector<16x128xbf16>
    %c80 = arith.constant 80 : index
    %c0_18 = arith.constant 0 : index
    %17 = vector.load %arg5[%c80, %c0_18] : memref<144x128xbf16, #tpu.memory_space<vmem>>, vector<16x128xbf16>
    tpu.vector_store %arg5[%c80, %c0_18], %16 {strides = array<i32>} : memref<144x128xbf16, #tpu.memory_space<vmem>>, vector<16x128xbf16>,
    %c0_19 = arith.constant 0 : index
    %c0_20 = arith.constant 0 : index
    %c20 = arith.constant 20 : index
    %18 = vector.load %arg3[%c0_19, %c0_20, %c20] : memref<1x16x256xbf16, #tpu.memory_space<vmem>>, vector<1x16x128xbf16>
    %19 = vector.shape_cast %18 : vector<1x16x128xbf16> to vector<16x128xbf16>
    %c96 = arith.constant 96 : index
    %c0_21 = arith.constant 0 : index
    %20 = vector.load %arg5[%c96, %c0_21] : memref<144x128xbf16, #tpu.memory_space<vmem>>, vector<16x128xbf16>
    tpu.vector_store %arg5[%c96, %c0_21], %19 {strides = array<i32>} : memref<144x128xbf16, #tpu.memory_space<vmem>>, vector<16x128xbf16>,
    %c0_22 = arith.constant 0 : index
    %c0_23 = arith.constant 0 : index
    %c21 = arith.constant 21 : index
    %21 = vector.load %arg3[%c0_22, %c0_23, %c21] : memref<1x16x256xbf16, #tpu.memory_space<vmem>>, vector<1x16x128xbf16>
    %22 = vector.shape_cast %21 : vector<1x16x128xbf16> to vector<16x128xbf16>
    %c112 = arith.constant 112 : index
    %c0_24 = arith.constant 0 : index
    %23 = vector.load %arg5[%c112, %c0_24] : memref<144x128xbf16, #tpu.memory_space<vmem>>, vector<16x128xbf16>
    tpu.vector_store %arg5[%c112, %c0_24], %22 {strides = array<i32>} : memref<144x128xbf16, #tpu.memory_space<vmem>>, vector<16x128xbf16>,
    %c0_25 = arith.constant 0 : index
    %c0_26 = arith.constant 0 : index
    %c22 = arith.constant 22 : index
    %24 = vector.load %arg3[%c0_25, %c0_26, %c22] : memref<1x16x256xbf16, #tpu.memory_space<vmem>>, vector<1x16x128xbf16>
    %25 = vector.shape_cast %24 : vector<1x16x128xbf16> to vector<16x128xbf16>
    %c128 = arith.constant 128 : index
    %c0_27 = arith.constant 0 : index
    %26 = vector.load %arg5[%c128, %c0_27] : memref<144x128xbf16, #tpu.memory_space<vmem>>, vector<16x128xbf16>
    tpu.vector_store %arg5[%c128, %c0_27], %25 {strides = array<i32>} : memref<144x128xbf16, #tpu.memory_space<vmem>>, vector<16x128xbf16>,
    %c0_28 = arith.constant 0 : index
    %c0_29 = arith.constant 0 : index
    %27 = vector.load %arg2[%c0_28, %c0_29] : memref<16x144xbf16, #tpu.memory_space<vmem>>, vector<16x144xbf16>
    %c0_30 = arith.constant 0 : index
    %c0_31 = arith.constant 0 : index
    %28 = vector.load %arg5[%c0_30, %c0_31] : memref<144x128xbf16, #tpu.memory_space<vmem>>, vector<144x128xbf16>
    %cst = arith.constant dense<0.000000e+00> : vector<16x128xf32>
    %29 = tpu.matmul %27, %28, %cst {dimension_numbers = #tpu.dot_dimension_numbers<[1], [0], [0], [1], [0, 0, 1, 1], [], []>} : vector<16x144xbf16>, vector<144x128xbf16>, vector<16x128xf32> -> vector<16x128xf32>
    %c0_32 = arith.constant 0 : index
    %c0_33 = arith.constant 0 : index
    %c0_34 = arith.constant 0 : index
    %30 = vector.load %arg4[%c0_32, %c0_33, %c0_34] : memref<1x16x128xf32, #tpu.memory_space<vmem>>, vector<1x16x128xf32>
    %31 = vector.shape_cast %30 : vector<1x16x128xf32> to vector<16x128xf32>
    %32 = vector.shape_cast %29 : vector<16x128xf32> to vector<1x16x128xf32>
    tpu.vector_store %arg4[%c0_32, %c0_33, %c0_34], %32 {strides = array<i32>} : memref<1x16x128xf32, #tpu.memory_space<vmem>>, vector<1x16x128xf32>,
    return
  }
  func.func @transform_0(%arg0: i32, %arg1: i32) -> (i32, i32) {
    %c0_i32 = arith.constant 0 : i32
    %c0_i32_0 = arith.constant 0 : i32
    return %arg0, %c0_i32 : i32, i32
  }
  func.func @transform_1(%arg0: i32, %arg1: i32) -> (i32, i32, i32) {
    %c0_i32 = arith.constant 0 : i32
    %c0_i32_0 = arith.constant 0 : i32
    %c0_i32_1 = arith.constant 0 : i32
    return %arg1, %c0_i32, %c0_i32_0 : i32, i32, i32
  }
  func.func @transform_2(%arg0: i32, %arg1: i32) -> (i32, i32, i32) {
    %c0_i32 = arith.constant 0 : i32
    %c0_i32_0 = arith.constant 0 : i32
    return %arg1, %arg0, %c0_i32 : i32, i32, i32
  }
}

</mosaic_0001>

<llo_original>
// kernel: _lambda_.2
$region0: #{_lambda_.2}
  #allocation0 [shape = 'u32[]', space=smem, size = 0x4, offset = 0x4, fixed_abs, tag = 'smem constant byte address 0x4 - core index']
  #allocation1 [shape = 'u32[144,128]{1,0:T(1,128)}', space=vmem, size = 0x12000, scoped, tag = 'internal scratch']
  #allocation2 [shape = 'bf16[144,256]{1,0:T(16,128)(2,1)}', space=vmem, size = 0x12000, scoped, tag = 'scratch operand']
  %s0 = inlined_call_operand.vmem [shape: bf16[16,144], index: 0, kind: input, shape index: {}]
  %s1 = inlined_call_operand.vmem [shape: bf16[2,16,384], index: 1, kind: input, shape index: {}]
  %s2 = inlined_call_operand.vmem [shape: bf16[2,16,384], index: 2, kind: input, shape index: {}]
  %s3 = inlined_call_operand.vmem [shape: bf16[2,16,256], index: 3, kind: output, shape index: {}]
  %s4 = sld [smem:[#allocation0]]
  $region45: #{_lambda_.2} parent=0
    _
  %s6 = ssub.s32 1, %s4
  %s7 = scalar_select 0, %s6, %s4
  loop: start=0, step=1, limit=4
  $region2: #{_lambda_.2} parent=0 // loop_pre_header
    _
  $region3: #{_lambda_.2} parent=0 // loop_header
    %s9 = sphi 0, %s13
    %p10 = scmp.ge.s32.totalorder %s9, 4
    %s16 = sphi 0, %s28
    %s17 = sphi 0, %s24
    %s18 = sphi 0, %s16
    %s19 = sphi 0, %s17
    %s20 = sphi 0, %s18
    %s21 = sphi 0, %s19
    %s31 = sphi 0, %s33
    %s34 = sphi 0, %s31
    %s35 = sphi 0, %s34
    %s51 = sphi 0, %s35
    %s57 = sphi 0, %s59
    %s60 = sphi 0, %s57
    %s61 = sphi 0, %s60
    %s77 = sphi 0, %s61
    %s83 = sphi 0, %s85
    %s86 = sphi 0, %s83
    %s87 = sphi 0, %s86
    %s103 = sphi 0, %s87
    %s111 = sphi 0, %s113
    %s114 = sphi 0, %s111
    %s115 = sphi 0, %s114
    %s131 = sphi 0, %s115
  $region4: #{_lambda_.2} parent=0 // loop_header_branch
    %12 = sbr.rel (%p10) target = $region8
  $region5: #{_lambda_.2} parent=0 // loop_body
    %s14 = ssub.s32 %s9, 1
    %s15 = ssub.s32 %s9, 2
    %s22 = sadd.s32 1, %s17
    %p23 = scmp.ge.s32.totalorder %s22, 2
    %s24 = scalar_select %p23, 0, %s22
    %s25 = sadd.s32 1, %s16
    %s26 = scalar_select %p23, %s25, %s16
    %p27 = scmp.ge.s32.totalorder %s26, 1
    %s28 = scalar_select %p27, 0, %s26
    %s29 = ssub.s32 %s16, %s28
    %p30 = scmp.eq.s32.totalorder %s29, 0
    %s32 = sadd.s32 %s31, 1
    %s33 = scalar_select %p30, %s31, %s32
    %p36 = pneg %p30
    %p37 = scmp.eq.s32.totalorder %s9, 1
    %p38 = por %p36, %p37
    %p39 = scmp.ne.s32.totalorder %s31, %s34
    %p40 = scmp.eq.s32.totalorder %s9, 0
    %p41 = por %p39, %p40
    %p42 = scmp.ne.s32.totalorder %s31, %s34
    %p43 = scmp.eq.s32.totalorder %s14, 1
    %p44 = por %p42, %p43
    %p45 = scmp.ne.s32.totalorder %s34, %s35
    %p46 = scmp.eq.s32.totalorder %s14, 0
    %p47 = por %p45, %p46
    %p48 = scmp.ne.s32.totalorder %s34, %s35
    %p49 = scmp.eq.s32.totalorder %s15, 1
    %p50 = por %p48, %p49
    %p52 = scmp.ne.s32.totalorder %s35, %s51
    %p53 = scmp.eq.s32.totalorder %s15, 0
    %p54 = por %p52, %p53
    %s55 = ssub.s32 %s17, %s24
    %p56 = scmp.eq.s32.totalorder %s55, 0
    %s58 = sadd.s32 %s57, 1
    %s59 = scalar_select %p56, %s57, %s58
    %p62 = pneg %p56
    %p63 = scmp.eq.s32.totalorder %s9, 1
    %p64 = por %p62, %p63
    %p65 = scmp.ne.s32.totalorder %s57, %s60
    %p66 = scmp.eq.s32.totalorder %s9, 0
    %p67 = por %p65, %p66
    %p68 = scmp.ne.s32.totalorder %s57, %s60
    %p69 = scmp.eq.s32.totalorder %s14, 1
    %p70 = por %p68, %p69
    %p71 = scmp.ne.s32.totalorder %s60, %s61
    %p72 = scmp.eq.s32.totalorder %s14, 0
    %p73 = por %p71, %p72
    %p74 = scmp.ne.s32.totalorder %s60, %s61
    %p75 = scmp.eq.s32.totalorder %s15, 1
    %p76 = por %p74, %p75
    %p78 = scmp.ne.s32.totalorder %s61, %s77
    %p79 = scmp.eq.s32.totalorder %s15, 0
    %p80 = por %p78, %p79
    %s81 = ssub.s32 %s17, %s24
    %p82 = scmp.eq.s32.totalorder %s81, 0
    %s84 = sadd.s32 %s83, 1
    %s85 = scalar_select %p82, %s83, %s84
    %p88 = pneg %p82
    %p89 = scmp.eq.s32.totalorder %s9, 1
    %p90 = por %p88, %p89
    %p91 = scmp.ne.s32.totalorder %s83, %s86
    %p92 = scmp.eq.s32.totalorder %s9, 0
    %p93 = por %p91, %p92
    %p94 = scmp.ne.s32.totalorder %s83, %s86
    %p95 = scmp.eq.s32.totalorder %s14, 1
    %p96 = por %p94, %p95
    %p97 = scmp.ne.s32.totalorder %s86, %s87
    %p98 = scmp.eq.s32.totalorder %s14, 0
    %p99 = por %p97, %p98
    %p100 = scmp.ne.s32.totalorder %s86, %s87
    %p101 = scmp.eq.s32.totalorder %s15, 1
    %p102 = por %p100, %p101
    %p104 = scmp.ne.s32.totalorder %s87, %s103
    %p105 = scmp.eq.s32.totalorder %s15, 0
    %p106 = por %p104, %p105
    %s107 = ssub.s32 %s17, %s24
    %s108 = ssub.s32 %s16, %s28
    %s109 = sor.u32 %s107, %s108
    %p110 = scmp.eq.s32.totalorder %s109, 0
    %s112 = sadd.s32 %s111, 1
    %s113 = scalar_select %p110, %s111, %s112
    %p116 = pneg %p110
    %p117 = scmp.eq.s32.totalorder %s9, 1
    %p118 = por %p116, %p117
    %p119 = scmp.ne.s32.totalorder %s111, %s114
    %p120 = scmp.eq.s32.totalorder %s9, 0
    %p121 = por %p119, %p120
    %p122 = scmp.ne.s32.totalorder %s111, %s114
    %p123 = scmp.eq.s32.totalorder %s14, 1
    %p124 = por %p122, %p123
    %p125 = scmp.ne.s32.totalorder %s114, %s115
    %p126 = scmp.eq.s32.totalorder %s14, 0
    %p127 = por %p125, %p126
    %p128 = scmp.ne.s32.totalorder %s114, %s115
    %p129 = scmp.eq.s32.totalorder %s15, 1
    %p130 = por %p128, %p129
    %p132 = scmp.ne.s32.totalorder %s115, %s131
    %p133 = scmp.eq.s32.totalorder %s15, 0
    %p134 = por %p132, %p133
    %p135 = scmp.le.s32.totalorder 1, %s9
    %p136 = scmp.lt.s32.totalorder %s9, 3
    %p137 = pnand %p135, %p136
    %p138 = pneg %p137
    // Predicated region
    $region9: #{_lambda_.2} parent=5 // pred_check
      _
    $region10: #{_lambda_.2} parent=5 // pred_check_branch
      %140 = sbr.rel (%p137) target = $region12
    $region11: #{_lambda_.2} parent=5 // pred_region
      %s141 = ssub.s32 %s9, 1
      // Predicated region
      $region13: #{_lambda_.2} parent=11 // pred_check
        %p142 = pneg %p47
      $region14: #{_lambda_.2} parent=11 // pred_check_branch
        %144 = sbr.rel (%p142) target = $region16
      $region15: #{_lambda_.2} parent=11 // pred_region
        %s145 = smul.u32 2, %s18
        %p146 = scmp.lt.s32.totalorder %s145, 1
        %s147 = scalar_select %p146, %s145, 1
        %s148 = smul.addr %s147, 2
        %s149 = smul.addr %s148, 4
        %s150 = scalar_lea.vmem %s0, %s149
        %s151 = smul.u32 2, %s18
      $region16: #{_lambda_.2} parent=11 // pred_fallthru
        _
    $region12: #{_lambda_.2} parent=5 // pred_fallthru
      _
    %p152 = scmp.lt.s32.totalorder %s9, 2
    // Predicated region
    $region17: #{_lambda_.2} parent=5 // pred_check
      %p153 = pneg %p152
    $region18: #{_lambda_.2} parent=5 // pred_check_branch
      %155 = sbr.rel (%p153) target = $region20
    $region19: #{_lambda_.2} parent=5 // pred_region
      // Predicated region
      $region21: #{_lambda_.2} parent=19 // pred_check
        %p156 = pneg %p67
      $region22: #{_lambda_.2} parent=19 // pred_check_branch
        %158 = sbr.rel (%p156) target = $region24
      $region23: #{_lambda_.2} parent=19 // pred_region
        %p159 = scmp.lt.s32.totalorder %s17, 1
        %s160 = scalar_select %p159, %s17, 1
        %s161 = smul.addr %s160, 6
        %s162 = smul.addr %s161, 4
        %s163 = scalar_lea.vmem %s1, %s162
      $region24: #{_lambda_.2} parent=19 // pred_fallthru
        _
      // Predicated region
      $region25: #{_lambda_.2} parent=19 // pred_check
        %p164 = pneg %p93
      $region26: #{_lambda_.2} parent=19 // pred_check_branch
        %166 = sbr.rel (%p164) target = $region28
      $region27: #{_lambda_.2} parent=19 // pred_region
        %p167 = scmp.lt.s32.totalorder %s17, 1
        %s168 = scalar_select %p167, %s17, 1
        %s169 = smul.addr %s168, 6
        %s170 = smul.addr %s169, 4
        %s171 = scalar_lea.vmem %s2, %s170
      $region28: #{_lambda_.2} parent=19 // pred_fallthru
        _
    $region20: #{_lambda_.2} parent=5 // pred_fallthru
      _
    %p172 = scmp.le.s32.totalorder 1, %s9
    %p173 = scmp.lt.s32.totalorder %s9, 3
    %p174 = pnand %p172, %p173
    %p175 = pneg %p174
    // Predicated region
    $region29: #{_lambda_.2} parent=5 // pred_check
      _
    $region30: #{_lambda_.2} parent=5 // pred_check_branch
      %177 = sbr.rel (%p174) target = $region32
    $region31: #{_lambda_.2} parent=5 // pred_region
      %s178 = ssub.s32 %s9, 1
      %s179 = smul.u32 2, %s18
      %p180 = scmp.lt.s32.totalorder %s179, 1
      %s181 = scalar_select %p180, %s179, 1
      %s182 = smul.addr %s181, 2
      %s183 = smul.addr %s182, 4
      %s184 = scalar_lea.vmem %s0, %s183
      %p185 = pneg %p47
      %p186 = pneg %p44
      %p187 = scmp.lt.s32.totalorder %s19, 1
      %s188 = scalar_select %p187, %s19, 1
      %s189 = smul.addr %s188, 6
      %s190 = smul.addr %s189, 4
      %s191 = scalar_lea.vmem %s1, %s190
      %p192 = pneg %p73
      %p193 = pneg %p70
      %p194 = scmp.lt.s32.totalorder %s19, 1
      %s195 = scalar_select %p194, %s19, 1
      %s196 = smul.addr %s195, 6
      %s197 = smul.addr %s196, 4
      %s198 = scalar_lea.vmem %s2, %s197
      %p199 = pneg %p99
      %p200 = pneg %p96
      %p201 = pneg %p127
      %p202 = pneg %p124
      %s203 = smul.u32 2, %s18
      %p204 = scmp.lt.s32.totalorder %s19, 1
      %s205 = scalar_select %p204, %s19, 1
      %p206 = scmp.lt.s32.totalorder %s203, 1
      %s207 = scalar_select %p206, %s203, 1
      %s208 = smul.addr %s207, 2
      %s209 = smul.addr %s205, 4
      %s210 = sadd.s32 %s208, %s209
      %s211 = smul.addr %s210, 4
      %s212 = scalar_lea.vmem %s3, %s211
      %s213 = smul.u32 2, %s18
      %p214 = scmp.lt.s32.totalorder %s213, 1
      %s215 = scalar_select %p214, %s213, 1
      %s216 = smul.addr %s215, 2
      %s217 = smul.addr %s216, 4
      %s218 = scalar_lea.vmem %s0, %s217
      %s219 = smul.u32 2, %s18
      %p220 = scmp.lt.s32.totalorder %s19, 1
      %s221 = scalar_select %p220, %s19, 1
      %s222 = smul.addr %s221, 6
      %s223 = smul.addr %s222, 4
      %s224 = scalar_lea.vmem %s1, %s223
      %p225 = scmp.lt.s32.totalorder %s19, 1
      %s226 = scalar_select %p225, %s19, 1
      %s227 = smul.addr %s226, 6
      %s228 = smul.addr %s227, 4
      %s229 = scalar_lea.vmem %s2, %s228
      %s230 = smul.u32 2, %s18
      %p231 = scmp.lt.s32.totalorder %s19, 1
      %s232 = scalar_select %p231, %s19, 1
      %p233 = scmp.lt.s32.totalorder %s230, 1
      %s234 = scalar_select %p233, %s230, 1
      %s235 = smul.addr %s234, 2
      %s236 = smul.addr %s232, 4
      %s237 = sadd.s32 %s235, %s236
      %s238 = smul.addr %s237, 4
      %s239 = scalar_lea.vmem %s3, %s238
      %s240 = smul.u32 2, %s18
      %v242 = vld [vmem:[%s224] sm:$0xff]
      %v243 = vld [vmem:[%s224 + $0xc] sm:$0xff]
      %v246 = vunpack.c.l.b16 %v242
      %v247 = vunpack.c.h.b16 %v242
      %v248 = vunpack.c.l.b16 %v243
      %v249 = vunpack.c.h.b16 %v243
      %v250 = vpack.c.b16 %v248, %v246
      %v251 = vpack.c.b16 %v249, %v247
      %254 = vst [vmem:[#allocation2] sm:$0xff] %v250
      %255 = vst [vmem:[#allocation2 + $0x8] sm:$0xff] %v251
      %v256 = vld [vmem:[%s224] sm:$0xff]
      %v257 = vld [vmem:[%s224 + $0x8] sm:$0xf]
      %v258 = vld [vmem:[%s224 + $0xc] sm:$0xff]
      %v259 = vld [vmem:[%s224 + $0x14] sm:$0xf]
      %v264 = vunpack.c.l.b16 %v256
      %v265 = vunpack.c.h.b16 %v256
      %v266 = vunpack.c.l.b16 %v257
      %v267 = vunpack.c.l.b16 %v258
      %v268 = vunpack.c.h.b16 %v258
      %v269 = vunpack.c.l.b16 %v259
      %v270 = vpack.c.b16 %v267, %v264
      %v271 = vpack.c.b16 %v268, %v265
      %v272 = vpack.c.b16 %v269, %v266
      %273 = vrot.lane.b32.xlu0 %v270, 127
      %v274 = vpop.permute.xlu0 %273
      %275 = vrot.lane.b32.xlu0 %v271, 127
      %v276 = vpop.permute.xlu0 %275
      %277 = vrot.lane.b32.xlu0 %v272, 127
      %v278 = vpop.permute.xlu0 %277
      %vm279 = vcmask 1039360
      %v280 = vsel %vm279, %v274, %v276
      %v281 = vsel %vm279, %v276, %v278
      %284 = vst [vmem:[#allocation2 + $0x10] sm:$0xff] %v280
      %285 = vst [vmem:[#allocation2 + $0x18] sm:$0xff] %v281
      %v286 = vld [vmem:[%s224] sm:$0xff]
      %v287 = vld [vmem:[%s224 + $0x8] sm:$0xf]
      %v288 = vld [vmem:[%s224 + $0xc] sm:$0xff]
      %v289 = vld [vmem:[%s224 + $0x14] sm:$0xf]
      %v294 = vunpack.c.l.b16 %v286
      %v295 = vunpack.c.h.b16 %v286
      %v296 = vunpack.c.l.b16 %v287
      %v297 = vunpack.c.l.b16 %v288
      %v298 = vunpack.c.h.b16 %v288
      %v299 = vunpack.c.l.b16 %v289
      %v300 = vpack.c.b16 %v297, %v294
      %v301 = vpack.c.b16 %v298, %v295
      %v302 = vpack.c.b16 %v299, %v296
      %303 = vrot.lane.b32.xlu0 %v300, 126
      %v304 = vpop.permute.xlu0 %303
      %305 = vrot.lane.b32.xlu0 %v301, 126
      %v306 = vpop.permute.xlu0 %305
      %307 = vrot.lane.b32.xlu0 %v302, 126
      %v308 = vpop.permute.xlu0 %307
      %vm309 = vcmask 1031168
      %v310 = vsel %vm309, %v304, %v306
      %v311 = vsel %vm309, %v306, %v308
      %314 = vst [vmem:[#allocation2 + $0x20] sm:$0xff] %v310
      %315 = vst [vmem:[#allocation2 + $0x28] sm:$0xff] %v311
      %v316 = vld [vmem:[%s229] sm:$0xff]
      %v317 = vld [vmem:[%s229 + $0xc] sm:$0xff]
      %v320 = vunpack.c.l.b16 %v316
      %v321 = vunpack.c.h.b16 %v316
      %v322 = vunpack.c.l.b16 %v317
      %v323 = vunpack.c.h.b16 %v317
      %v324 = vpack.c.b16 %v322, %v320
      %v325 = vpack.c.b16 %v323, %v321
      %328 = vst [vmem:[#allocation2 + $0x30] sm:$0xff] %v324
      %329 = vst [vmem:[#allocation2 + $0x38] sm:$0xff] %v325
      %v330 = vld [vmem:[%s229] sm:$0xff]
      %v331 = vld [vmem:[%s229 + $0x8] sm:$0xf]
      %v332 = vld [vmem:[%s229 + $0xc] sm:$0xff]
      %v333 = vld [vmem:[%s229 + $0x14] sm:$0xf]
      %v338 = vunpack.c.l.b16 %v330
      %v339 = vunpack.c.h.b16 %v330
      %v340 = vunpack.c.l.b16 %v331
      %v341 = vunpack.c.l.b16 %v332
      %v342 = vunpack.c.h.b16 %v332
      %v343 = vunpack.c.l.b16 %v333
      %v344 = vpack.c.b16 %v341, %v338
      %v345 = vpack.c.b16 %v342, %v339
      %v346 = vpack.c.b16 %v343, %v340
      %347 = vrot.lane.b32.xlu0 %v344, 127
      %v348 = vpop.permute.xlu0 %347
      %349 = vrot.lane.b32.xlu0 %v345, 127
      %v350 = vpop.permute.xlu0 %349
      %351 = vrot.lane.b32.xlu0 %v346, 127
      %v352 = vpop.permute.xlu0 %351
      %v353 = vsel %vm279, %v348, %v350
      %v354 = vsel %vm279, %v350, %v352
      %357 = vst [vmem:[#allocation2 + $0x40] sm:$0xff] %v353
      %358 = vst [vmem:[#allocation2 + $0x48] sm:$0xff] %v354
      %v359 = vld [vmem:[%s229] sm:$0xff]
      %v360 = vld [vmem:[%s229 + $0x8] sm:$0xf]
      %v361 = vld [vmem:[%s229 + $0xc] sm:$0xff]
      %v362 = vld [vmem:[%s229 + $0x14] sm:$0xf]
      %v367 = vunpack.c.l.b16 %v359
      %v368 = vunpack.c.h.b16 %v359
      %v369 = vunpack.c.l.b16 %v360
      %v370 = vunpack.c.l.b16 %v361
      %v371 = vunpack.c.h.b16 %v361
      %v372 = vunpack.c.l.b16 %v362
      %v373 = vpack.c.b16 %v370, %v367
      %v374 = vpack.c.b16 %v371, %v368
      %v375 = vpack.c.b16 %v372, %v369
      %376 = vrot.lane.b32.xlu0 %v373, 126
      %v377 = vpop.permute.xlu0 %376
      %378 = vrot.lane.b32.xlu0 %v374, 126
      %v379 = vpop.permute.xlu0 %378
      %380 = vrot.lane.b32.xlu0 %v375, 126
      %v381 = vpop.permute.xlu0 %380
      %v382 = vsel %vm309, %v377, %v379
      %v383 = vsel %vm309, %v379, %v381
      %386 = vst [vmem:[#allocation2 + $0x50] sm:$0xff] %v382
      %387 = vst [vmem:[#allocation2 + $0x58] sm:$0xff] %v383
      %v388 = vld [vmem:[%s224] sm:$0xff]
      %v389 = vld [vmem:[%s224 + $0x8] sm:$0xf]
      %v390 = vld [vmem:[%s224 + $0xc] sm:$0xff]
      %v391 = vld [vmem:[%s224 + $0x14] sm:$0xf]
      %v396 = vunpack.c.l.b16 %v388
      %v397 = vunpack.c.h.b16 %v388
      %v398 = vunpack.c.l.b16 %v389
      %v399 = vunpack.c.l.b16 %v390
      %v400 = vunpack.c.h.b16 %v390
      %v401 = vunpack.c.l.b16 %v391
      %v402 = vpack.c.b16 %v399, %v396
      %v403 = vpack.c.b16 %v400, %v397
      %v404 = vpack.c.b16 %v401, %v398
      %405 = vrot.lane.b32.xlu0 %v402, 110
      %v406 = vpop.permute.xlu0 %405
      %407 = vrot.lane.b32.xlu0 %v403, 110
      %v408 = vpop.permute.xlu0 %407
      %409 = vrot.lane.b32.xlu0 %v404, 110
      %v410 = vpop.permute.xlu0 %409
      %vm411 = vcmask 900096
      %v412 = vsel %vm411, %v406, %v408
      %v413 = vsel %vm411, %v408, %v410
      %416 = vst [vmem:[#allocation2 + $0x60] sm:$0xff] %v412
      %417 = vst [vmem:[#allocation2 + $0x68] sm:$0xff] %v413
      %v418 = vld [vmem:[%s224] sm:$0xff]
      %v419 = vld [vmem:[%s224 + $0x8] sm:$0xf]
      %v420 = vld [vmem:[%s224 + $0xc] sm:$0xff]
      %v421 = vld [vmem:[%s224 + $0x14] sm:$0xf]
      %v426 = vunpack.c.l.b16 %v418
      %v427 = vunpack.c.h.b16 %v418
      %v428 = vunpack.c.l.b16 %v419
      %v429 = vunpack.c.l.b16 %v420
      %v430 = vunpack.c.h.b16 %v420
      %v431 = vunpack.c.l.b16 %v421
      %v432 = vpack.c.b16 %v429, %v426
      %v433 = vpack.c.b16 %v430, %v427
      %v434 = vpack.c.b16 %v431, %v428
      %435 = vrot.lane.b32.xlu0 %v432, 109
      %v436 = vpop.permute.xlu0 %435
      %437 = vrot.lane.b32.xlu0 %v433, 109
      %v438 = vpop.permute.xlu0 %437
      %439 = vrot.lane.b32.xlu0 %v434, 109
      %v440 = vpop.permute.xlu0 %439
      %vm441 = vcmask 891904
      %v442 = vsel %vm441, %v436, %v438
      %v443 = vsel %vm441, %v438, %v440
      %446 = vst [vmem:[#allocation2 + $0x70] sm:$0xff] %v442
      %447 = vst [vmem:[#allocation2 + $0x78] sm:$0xff] %v443
      %v448 = vld [vmem:[%s224] sm:$0xff]
      %v449 = vld [vmem:[%s224 + $0x8] sm:$0xf]
      %v450 = vld [vmem:[%s224 + $0xc] sm:$0xff]
      %v451 = vld [vmem:[%s224 + $0x14] sm:$0xf]
      %v456 = vunpack.c.l.b16 %v448
      %v457 = vunpack.c.h.b16 %v448
      %v458 = vunpack.c.l.b16 %v449
      %v459 = vunpack.c.l.b16 %v450
      %v460 = vunpack.c.h.b16 %v450
      %v461 = vunpack.c.l.b16 %v451
      %v462 = vpack.c.b16 %v459, %v456
      %v463 = vpack.c.b16 %v460, %v457
      %v464 = vpack.c.b16 %v461, %v458
      %465 = vrot.lane.b32.xlu0 %v462, 108
      %v466 = vpop.permute.xlu0 %465
      %467 = vrot.lane.b32.xlu0 %v463, 108
      %v468 = vpop.permute.xlu0 %467
      %469 = vrot.lane.b32.xlu0 %v464, 108
      %v470 = vpop.permute.xlu0 %469
      %vm471 = vcmask 883712
      %v472 = vsel %vm471, %v466, %v468
      %v473 = vsel %vm471, %v468, %v470
      %476 = vst [vmem:[#allocation2 + $0x80] sm:$0xff] %v472
      %477 = vst [vmem:[#allocation2 + $0x88] sm:$0xff] %v473
      %v478 = vld [vmem:[%s218] sm:$0xff]
      %v479 = vld [vmem:[%s218 + $0x8] sm:$0xff]
      %v480 = vld [vmem:[#allocation2] sm:$0xff]
      %v481 = vld [vmem:[#allocation2 + $0x8] sm:$0xff]
      %v482 = vld [vmem:[#allocation2 + $0x10] sm:$0xff]
      %v483 = vld [vmem:[#allocation2 + $0x18] sm:$0xff]
      %v484 = vld [vmem:[#allocation2 + $0x20] sm:$0xff]
      %v485 = vld [vmem:[#allocation2 + $0x28] sm:$0xff]
      %v486 = vld [vmem:[#allocation2 + $0x30] sm:$0xff]
      %v487 = vld [vmem:[#allocation2 + $0x38] sm:$0xff]
      %v488 = vld [vmem:[#allocation2 + $0x40] sm:$0xff]
      %v489 = vld [vmem:[#allocation2 + $0x48] sm:$0xff]
      %v490 = vld [vmem:[#allocation2 + $0x50] sm:$0xff]
      %v491 = vld [vmem:[#allocation2 + $0x58] sm:$0xff]
      %v492 = vld [vmem:[#allocation2 + $0x60] sm:$0xff]
      %v493 = vld [vmem:[#allocation2 + $0x68] sm:$0xff]
      %v494 = vld [vmem:[#allocation2 + $0x70] sm:$0xff]
      %v495 = vld [vmem:[#allocation2 + $0x78] sm:$0xff]
      %v496 = vld [vmem:[#allocation2 + $0x80] sm:$0xff]
      %v497 = vld [vmem:[#allocation2 + $0x88] sm:$0xff]
      %v500 = vunpack.c.l.b16 %v478
      %v501 = vunpack.c.h.b16 %v478
      %v502 = vunpack.c.l.b16 %v479
      %v503 = vunpack.c.h.b16 %v479
      %v504 = vpack.c.b16 %v502, %v500
      %v505 = vpack.c.b16 %v503, %v501
      %vm507 = vcmask 130048
      %v509 = vsel %vm507, %v505, 0
      %511 = vmatprep.subr.bf16.mxu0 %v481
      %512 = vmatpush1.bf16.msra.mxu0 %v480
      %513 = vmatprep.subr.bf16.mxu0 %v483
      %514 = vmatpush1.bf16.msra.mxu0 %v482
      %515 = vmatprep.subr.bf16.mxu0 %v485
      %516 = vmatpush1.bf16.msra.mxu0 %v484
      %517 = vmatprep.subr.bf16.mxu0 %v487
      %518 = vmatpush1.bf16.msra.mxu0 %v486
      %519 = vmatprep.subr.bf16.mxu0 %v489
      %520 = vmatpush1.bf16.msra.mxu0 %v488
      %521 = vmatprep.subr.bf16.mxu0 %v491
      %522 = vmatpush1.bf16.msra.mxu0 %v490
      %523 = vmatprep.subr.bf16.mxu0 %v493
      %524 = vmatpush1.bf16.msra.mxu0 %v492
      %525 = vmatprep.subr.bf16.mxu0 %v495
      %526 = vmatpush1.bf16.msra.mxu0 %v494
      %527 = vmatprep.subr.bf16.mxu0 %v497
      %528 = vmatpush1.bf16.msra.mxu0 %v496
      %529 = vmatprep.subr.bf16.mxu0 0
      %530 = vmatpush1.bf16.msra.mxu0 0
      %531 = vmatprep.subr.bf16.mxu0 0
      %532 = vmatpush1.bf16.msra.mxu0 0
      %533 = vmatprep.subr.bf16.mxu0 0
      %534 = vmatpush1.bf16.msra.mxu0 0
      %535 = vmatprep.subr.bf16.mxu0 0
      %536 = vmatpush1.bf16.msra.mxu0 0
      %537 = vmatprep.subr.bf16.mxu0 0
      %538 = vmatpush1.bf16.msra.mxu0 0
      %539 = vmatprep.subr.bf16.mxu0 0
      %540 = vmatpush1.bf16.msra.mxu0 0
      %541 = vmatprep.subr.bf16.mxu0 0
      %542 = vmatpush1.bf16.msra.mxu0 0
      %543 = vmatprep.mubr.bf16.mxu0 %v509
      %544 = vmatmul.mubr.bf16.gmra.mrb[0].mxu0 %v504
      %v545 = vpop.f32.mrb[0].mxu0
      %v546 = vadd.f32 0.0, %v545
      %v547 = vpop.f32.mrb[0].mxu0
      %v548 = vadd.f32 0.0, %v547
      %v549 = vpop.f32.mrb[0].mxu0
      %v550 = vadd.f32 0.0, %v549
      %v551 = vpop.f32.mrb[0].mxu0
      %v552 = vadd.f32 0.0, %v551
      %553 = vdwg.mxu0
      %vm554 = vcmp.ge.f32.partialorder %v546, 0.0
      %vm555 = vcmp.ge.f32.partialorder %v548, 0.0
      %vm556 = vcmp.ge.f32.partialorder %v550, 0.0
      %vm557 = vcmp.ge.f32.partialorder %v552, 0.0
      %v558 = vmul.f32 %v546, 0.2
      %v559 = vmul.f32 %v548, 0.2
      %v560 = vmul.f32 %v550, 0.2
      %v561 = vmul.f32 %v552, 0.2
      %v562 = vsel %vm554, %v546, %v558
      %v563 = vsel %vm555, %v548, %v559
      %v564 = vsel %vm556, %v550, %v560
      %v565 = vsel %vm557, %v552, %v561
      %v566 = vpack.c.bf16 %v564, %v562
      %v567 = vpack.c.bf16 %v565, %v563
      %v570 = vunpack.c.l.b16 %v566
      %v571 = vunpack.c.l.b16 %v567
      %v572 = vunpack.c.h.b16 %v566
      %v573 = vunpack.c.h.b16 %v567
      %v574 = vpack.c.b16 %v571, %v570
      %v575 = vpack.c.b16 %v573, %v572
      %578 = vst [vmem:[%s239] sm:$0xff] %v574
      %579 = vst [vmem:[%s239 + $0x8] sm:$0xff] %v575
      %s580 = smul.u32 2, %s18
      %p581 = scmp.lt.s32.totalorder %s19, 1
      %s582 = scalar_select %p581, %s19, 1
      %p583 = scmp.lt.s32.totalorder %s580, 1
      %s584 = scalar_select %p583, %s580, 1
      %s585 = smul.addr %s584, 2
      %s586 = smul.addr %s582, 4
      %s587 = sadd.s32 %s585, %s586
      %s588 = smul.addr %s587, 4
      %s589 = scalar_lea.vmem %s3, %s588
      // Predicated region
      $region33: #{_lambda_.2} parent=31 // pred_check
        %p590 = pneg %p124
      $region34: #{_lambda_.2} parent=31 // pred_check_branch
        %592 = sbr.rel (%p590) target = $region36
      $region35: #{_lambda_.2} parent=31 // pred_region
        %s593 = smul.u32 2, %s18
      $region36: #{_lambda_.2} parent=31 // pred_fallthru
        _
    $region32: #{_lambda_.2} parent=5 // pred_fallthru
      _
    %p594 = scmp.le.s32.totalorder 2, %s9
    // Predicated region
    $region37: #{_lambda_.2} parent=5 // pred_check
      %p595 = pneg %p594
    $region38: #{_lambda_.2} parent=5 // pred_check_branch
      %597 = sbr.rel (%p595) target = $region40
    $region39: #{_lambda_.2} parent=5 // pred_region
      %s598 = ssub.s32 %s9, 2
      // Predicated region
      $region41: #{_lambda_.2} parent=39 // pred_check
        %p599 = pneg %p130
      $region42: #{_lambda_.2} parent=39 // pred_check_branch
        %601 = sbr.rel (%p599) target = $region44
      $region43: #{_lambda_.2} parent=39 // pred_region
        %s602 = smul.u32 2, %s20
        %p603 = scmp.lt.s32.totalorder %s21, 1
        %s604 = scalar_select %p603, %s21, 1
        %p605 = scmp.lt.s32.totalorder %s602, 1
        %s606 = scalar_select %p605, %s602, 1
        %s607 = smul.addr %s606, 2
        %s608 = smul.addr %s604, 4
        %s609 = sadd.s32 %s607, %s608
        %s610 = smul.addr %s609, 4
        %s611 = scalar_lea.vmem %s3, %s610
      $region44: #{_lambda_.2} parent=39 // pred_fallthru
        _
    $region40: #{_lambda_.2} parent=5 // pred_fallthru
      _
  $region6: #{_lambda_.2} parent=0 // loop_footer
    %s13 = sadd.s32 1, %s9
  $region7: #{_lambda_.2} parent=0 // loop_footer_branch
    %8 = sbr.rel target = $region3
  $region8: #{_lambda_.2} parent=0 // loop_exit
    _

// kernel: _lambda_.3
$region0: #{_lambda_.3}
  #allocation0 [shape = 'u32[]', space=smem, size = 0x4, offset = 0x4, fixed_abs, tag = 'smem constant byte address 0x4 - core index']
  #allocation1 [shape = 'u32[144,128]{1,0:T(1,128)}', space=vmem, size = 0x12000, scoped, tag = 'internal scratch']
  #allocation2 [shape = 'bf16[144,128]{1,0:T(16,128)(2,1)}', space=vmem, size = 0x9000, scoped, tag = 'scratch operand']
  %s0 = inlined_call_operand.vmem [shape: bf16[16,144], index: 0, kind: input, shape index: {}]
  %s1 = inlined_call_operand.vmem [shape: bf16[2,16,256], index: 1, kind: input, shape index: {}]
  %s2 = inlined_call_operand.vmem [shape: f32[2,16,128], index: 2, kind: output, shape index: {}]
  %s3 = sld [smem:[#allocation0]]
  $region41: #{_lambda_.3} parent=0
    _
  %s5 = ssub.s32 1, %s3
  %s6 = scalar_select 0, %s5, %s3
  loop: start=0, step=1, limit=4
  $region2: #{_lambda_.3} parent=0 // loop_pre_header
    _
  $region3: #{_lambda_.3} parent=0 // loop_header
    %s8 = sphi 0, %s12
    %p9 = scmp.ge.s32.totalorder %s8, 4
    %s15 = sphi 0, %s27
    %s16 = sphi 0, %s23
    %s17 = sphi 0, %s15
    %s18 = sphi 0, %s16
    %s19 = sphi 0, %s17
    %s20 = sphi 0, %s18
    %s30 = sphi 0, %s32
    %s33 = sphi 0, %s30
    %s34 = sphi 0, %s33
    %s50 = sphi 0, %s34
    %s56 = sphi 0, %s58
    %s59 = sphi 0, %s56
    %s60 = sphi 0, %s59
    %s76 = sphi 0, %s60
    %s84 = sphi 0, %s86
    %s87 = sphi 0, %s84
    %s88 = sphi 0, %s87
    %s104 = sphi 0, %s88
  $region4: #{_lambda_.3} parent=0 // loop_header_branch
    %11 = sbr.rel (%p9) target = $region8
  $region5: #{_lambda_.3} parent=0 // loop_body
    %s13 = ssub.s32 %s8, 1
    %s14 = ssub.s32 %s8, 2
    %s21 = sadd.s32 1, %s16
    %p22 = scmp.ge.s32.totalorder %s21, 2
    %s23 = scalar_select %p22, 0, %s21
    %s24 = sadd.s32 1, %s15
    %s25 = scalar_select %p22, %s24, %s15
    %p26 = scmp.ge.s32.totalorder %s25, 1
    %s27 = scalar_select %p26, 0, %s25
    %s28 = ssub.s32 %s15, %s27
    %p29 = scmp.eq.s32.totalorder %s28, 0
    %s31 = sadd.s32 %s30, 1
    %s32 = scalar_select %p29, %s30, %s31
    %p35 = pneg %p29
    %p36 = scmp.eq.s32.totalorder %s8, 1
    %p37 = por %p35, %p36
    %p38 = scmp.ne.s32.totalorder %s30, %s33
    %p39 = scmp.eq.s32.totalorder %s8, 0
    %p40 = por %p38, %p39
    %p41 = scmp.ne.s32.totalorder %s30, %s33
    %p42 = scmp.eq.s32.totalorder %s13, 1
    %p43 = por %p41, %p42
    %p44 = scmp.ne.s32.totalorder %s33, %s34
    %p45 = scmp.eq.s32.totalorder %s13, 0
    %p46 = por %p44, %p45
    %p47 = scmp.ne.s32.totalorder %s33, %s34
    %p48 = scmp.eq.s32.totalorder %s14, 1
    %p49 = por %p47, %p48
    %p51 = scmp.ne.s32.totalorder %s34, %s50
    %p52 = scmp.eq.s32.totalorder %s14, 0
    %p53 = por %p51, %p52
    %s54 = ssub.s32 %s16, %s23
    %p55 = scmp.eq.s32.totalorder %s54, 0
    %s57 = sadd.s32 %s56, 1
    %s58 = scalar_select %p55, %s56, %s57
    %p61 = pneg %p55
    %p62 = scmp.eq.s32.totalorder %s8, 1
    %p63 = por %p61, %p62
    %p64 = scmp.ne.s32.totalorder %s56, %s59
    %p65 = scmp.eq.s32.totalorder %s8, 0
    %p66 = por %p64, %p65
    %p67 = scmp.ne.s32.totalorder %s56, %s59
    %p68 = scmp.eq.s32.totalorder %s13, 1
    %p69 = por %p67, %p68
    %p70 = scmp.ne.s32.totalorder %s59, %s60
    %p71 = scmp.eq.s32.totalorder %s13, 0
    %p72 = por %p70, %p71
    %p73 = scmp.ne.s32.totalorder %s59, %s60
    %p74 = scmp.eq.s32.totalorder %s14, 1
    %p75 = por %p73, %p74
    %p77 = scmp.ne.s32.totalorder %s60, %s76
    %p78 = scmp.eq.s32.totalorder %s14, 0
    %p79 = por %p77, %p78
    %s80 = ssub.s32 %s16, %s23
    %s81 = ssub.s32 %s15, %s27
    %s82 = sor.u32 %s80, %s81
    %p83 = scmp.eq.s32.totalorder %s82, 0
    %s85 = sadd.s32 %s84, 1
    %s86 = scalar_select %p83, %s84, %s85
    %p89 = pneg %p83
    %p90 = scmp.eq.s32.totalorder %s8, 1
    %p91 = por %p89, %p90
    %p92 = scmp.ne.s32.totalorder %s84, %s87
    %p93 = scmp.eq.s32.totalorder %s8, 0
    %p94 = por %p92, %p93
    %p95 = scmp.ne.s32.totalorder %s84, %s87
    %p96 = scmp.eq.s32.totalorder %s13, 1
    %p97 = por %p95, %p96
    %p98 = scmp.ne.s32.totalorder %s87, %s88
    %p99 = scmp.eq.s32.totalorder %s13, 0
    %p100 = por %p98, %p99
    %p101 = scmp.ne.s32.totalorder %s87, %s88
    %p102 = scmp.eq.s32.totalorder %s14, 1
    %p103 = por %p101, %p102
    %p105 = scmp.ne.s32.totalorder %s88, %s104
    %p106 = scmp.eq.s32.totalorder %s14, 0
    %p107 = por %p105, %p106
    %p108 = scmp.le.s32.totalorder 1, %s8
    %p109 = scmp.lt.s32.totalorder %s8, 3
    %p110 = pnand %p108, %p109
    %p111 = pneg %p110
    // Predicated region
    $region9: #{_lambda_.3} parent=5 // pred_check
      _
    $region10: #{_lambda_.3} parent=5 // pred_check_branch
      %113 = sbr.rel (%p110) target = $region12
    $region11: #{_lambda_.3} parent=5 // pred_region
      %s114 = ssub.s32 %s8, 1
      // Predicated region
      $region13: #{_lambda_.3} parent=11 // pred_check
        %p115 = pneg %p46
      $region14: #{_lambda_.3} parent=11 // pred_check_branch
        %117 = sbr.rel (%p115) target = $region16
      $region15: #{_lambda_.3} parent=11 // pred_region
        %s118 = smul.u32 2, %s17
        %p119 = scmp.lt.s32.totalorder %s118, 1
        %s120 = scalar_select %p119, %s118, 1
        %s121 = smul.addr %s120, 2
        %s122 = smul.addr %s121, 4
        %s123 = scalar_lea.vmem %s0, %s122
        %s124 = smul.u32 2, %s17
      $region16: #{_lambda_.3} parent=11 // pred_fallthru
        _
    $region12: #{_lambda_.3} parent=5 // pred_fallthru
      _
    %p125 = scmp.lt.s32.totalorder %s8, 2
    // Predicated region
    $region17: #{_lambda_.3} parent=5 // pred_check
      %p126 = pneg %p125
    $region18: #{_lambda_.3} parent=5 // pred_check_branch
      %128 = sbr.rel (%p126) target = $region20
    $region19: #{_lambda_.3} parent=5 // pred_region
      // Predicated region
      $region21: #{_lambda_.3} parent=19 // pred_check
        %p129 = pneg %p66
      $region22: #{_lambda_.3} parent=19 // pred_check_branch
        %131 = sbr.rel (%p129) target = $region24
      $region23: #{_lambda_.3} parent=19 // pred_region
        %p132 = scmp.lt.s32.totalorder %s16, 1
        %s133 = scalar_select %p132, %s16, 1
        %s134 = smul.addr %s133, 4
        %s135 = smul.addr %s134, 4
        %s136 = scalar_lea.vmem %s1, %s135
      $region24: #{_lambda_.3} parent=19 // pred_fallthru
        _
    $region20: #{_lambda_.3} parent=5 // pred_fallthru
      _
    %p137 = scmp.le.s32.totalorder 1, %s8
    %p138 = scmp.lt.s32.totalorder %s8, 3
    %p139 = pnand %p137, %p138
    %p140 = pneg %p139
    // Predicated region
    $region25: #{_lambda_.3} parent=5 // pred_check
      _
    $region26: #{_lambda_.3} parent=5 // pred_check_branch
      %142 = sbr.rel (%p139) target = $region28
    $region27: #{_lambda_.3} parent=5 // pred_region
      %s143 = ssub.s32 %s8, 1
      %s144 = smul.u32 2, %s17
      %p145 = scmp.lt.s32.totalorder %s144, 1
      %s146 = scalar_select %p145, %s144, 1
      %s147 = smul.addr %s146, 2
      %s148 = smul.addr %s147, 4
      %s149 = scalar_lea.vmem %s0, %s148
      %p150 = pneg %p46
      %p151 = pneg %p43
      %p152 = scmp.lt.s32.totalorder %s18, 1
      %s153 = scalar_select %p152, %s18, 1
      %s154 = smul.addr %s153, 4
      %s155 = smul.addr %s154, 4
      %s156 = scalar_lea.vmem %s1, %s155
      %p157 = pneg %p72
      %p158 = pneg %p69
      %p159 = pneg %p100
      %p160 = pneg %p97
      %s161 = smul.u32 2, %s17
      %p162 = scmp.lt.s32.totalorder %s18, 1
      %s163 = scalar_select %p162, %s18, 1
      %p164 = scmp.lt.s32.totalorder %s161, 1
      %s165 = scalar_select %p164, %s161, 1
      %s166 = smul.addr %s163, 2
      %s167 = sadd.s32 %s165, %s166
      %s168 = smul.addr %s167, 8
      %s169 = scalar_lea.vmem %s2, %s168
      %s170 = smul.u32 2, %s17
      %p171 = scmp.lt.s32.totalorder %s170, 1
      %s172 = scalar_select %p171, %s170, 1
      %s173 = smul.addr %s172, 2
      %s174 = smul.addr %s173, 4
      %s175 = scalar_lea.vmem %s0, %s174
      %s176 = smul.u32 2, %s17
      %p177 = scmp.lt.s32.totalorder %s18, 1
      %s178 = scalar_select %p177, %s18, 1
      %s179 = smul.addr %s178, 4
      %s180 = smul.addr %s179, 4
      %s181 = scalar_lea.vmem %s1, %s180
      %s182 = smul.u32 2, %s17
      %p183 = scmp.lt.s32.totalorder %s18, 1
      %s184 = scalar_select %p183, %s18, 1
      %p185 = scmp.lt.s32.totalorder %s182, 1
      %s186 = scalar_select %p185, %s182, 1
      %s187 = smul.addr %s184, 2
      %s188 = sadd.s32 %s186, %s187
      %s189 = smul.addr %s188, 8
      %s190 = scalar_lea.vmem %s2, %s189
      %s191 = smul.u32 2, %s17
      %v193 = vld [vmem:[%s181] sm:$0xf]
      %v194 = vld [vmem:[%s181 + $0x8] sm:$0xf]
      %v197 = vunpack.c.l.b16 %v193
      %v198 = vunpack.c.l.b16 %v194
      %v199 = vpack.c.b16 %v198, %v197
      %201 = vst [vmem:[#allocation2] sm:$0xff] %v199
      %v202 = vld [vmem:[%s181] sm:$0xff]
      %v203 = vld [vmem:[%s181 + $0x8] sm:$0xff]
      %v206 = vunpack.c.l.b16 %v202
      %v207 = vunpack.c.h.b16 %v202
      %v208 = vunpack.c.l.b16 %v203
      %v209 = vunpack.c.h.b16 %v203
      %v210 = vpack.c.b16 %v208, %v206
      %v211 = vpack.c.b16 %v209, %v207
      %212 = vrot.lane.b32.xlu0 %v210, 127
      %v213 = vpop.permute.xlu0 %212
      %214 = vrot.lane.b32.xlu0 %v211, 127
      %v215 = vpop.permute.xlu0 %214
      %vm216 = vcmask 1039360
      %v217 = vsel %vm216, %v213, %v215
      %219 = vst [vmem:[#allocation2 + $0x8] sm:$0xff] %v217
      %v220 = vld [vmem:[%s181] sm:$0xff]
      %v221 = vld [vmem:[%s181 + $0x8] sm:$0xff]
      %v224 = vunpack.c.l.b16 %v220
      %v225 = vunpack.c.h.b16 %v220
      %v226 = vunpack.c.l.b16 %v221
      %v227 = vunpack.c.h.b16 %v221
      %v228 = vpack.c.b16 %v226, %v224
      %v229 = vpack.c.b16 %v227, %v225
      %230 = vrot.lane.b32.xlu0 %v228, 126
      %v231 = vpop.permute.xlu0 %230
      %232 = vrot.lane.b32.xlu0 %v229, 126
      %v233 = vpop.permute.xlu0 %232
      %vm234 = vcmask 1031168
      %v235 = vsel %vm234, %v231, %v233
      %237 = vst [vmem:[#allocation2 + $0x10] sm:$0xff] %v235
      %v238 = vld [vmem:[%s181] sm:$0xff]
      %v239 = vld [vmem:[%s181 + $0x8] sm:$0xff]
      %v242 = vunpack.c.l.b16 %v238
      %v243 = vunpack.c.h.b16 %v238
      %v244 = vunpack.c.l.b16 %v239
      %v245 = vunpack.c.h.b16 %v239
      %v246 = vpack.c.b16 %v244, %v242
      %v247 = vpack.c.b16 %v245, %v243
      %248 = vrot.lane.b32.xlu0 %v246, 118
      %v249 = vpop.permute.xlu0 %248
      %250 = vrot.lane.b32.xlu0 %v247, 118
      %v251 = vpop.permute.xlu0 %250
      %vm252 = vcmask 965632
      %v253 = vsel %vm252, %v249, %v251
      %255 = vst [vmem:[#allocation2 + $0x18] sm:$0xff] %v253
      %v256 = vld [vmem:[%s181] sm:$0xff]
      %v257 = vld [vmem:[%s181 + $0x8] sm:$0xff]
      %v260 = vunpack.c.l.b16 %v256
      %v261 = vunpack.c.h.b16 %v256
      %v262 = vunpack.c.l.b16 %v257
      %v263 = vunpack.c.h.b16 %v257
      %v264 = vpack.c.b16 %v262, %v260
      %v265 = vpack.c.b16 %v263, %v261
      %266 = vrot.lane.b32.xlu0 %v264, 117
      %v267 = vpop.permute.xlu0 %266
      %268 = vrot.lane.b32.xlu0 %v265, 117
      %v269 = vpop.permute.xlu0 %268
      %vm270 = vcmask 957440
      %v271 = vsel %vm270, %v267, %v269
      %273 = vst [vmem:[#allocation2 + $0x20] sm:$0xff] %v271
      %v274 = vld [vmem:[%s181] sm:$0xff]
      %v275 = vld [vmem:[%s181 + $0x8] sm:$0xff]
      %v278 = vunpack.c.l.b16 %v274
      %v279 = vunpack.c.h.b16 %v274
      %v280 = vunpack.c.l.b16 %v275
      %v281 = vunpack.c.h.b16 %v275
      %v282 = vpack.c.b16 %v280, %v278
      %v283 = vpack.c.b16 %v281, %v279
      %284 = vrot.lane.b32.xlu0 %v282, 116
      %v285 = vpop.permute.xlu0 %284
      %286 = vrot.lane.b32.xlu0 %v283, 116
      %v287 = vpop.permute.xlu0 %286
      %vm288 = vcmask 949248
      %v289 = vsel %vm288, %v285, %v287
      %291 = vst [vmem:[#allocation2 + $0x28] sm:$0xff] %v289
      %v292 = vld [vmem:[%s181] sm:$0xff]
      %v293 = vld [vmem:[%s181 + $0x8] sm:$0xff]
      %v296 = vunpack.c.l.b16 %v292
      %v297 = vunpack.c.h.b16 %v292
      %v298 = vunpack.c.l.b16 %v293
      %v299 = vunpack.c.h.b16 %v293
      %v300 = vpack.c.b16 %v298, %v296
      %v301 = vpack.c.b16 %v299, %v297
      %302 = vrot.lane.b32.xlu0 %v300, 108
      %v303 = vpop.permute.xlu0 %302
      %304 = vrot.lane.b32.xlu0 %v301, 108
      %v305 = vpop.permute.xlu0 %304
      %vm306 = vcmask 883712
      %v307 = vsel %vm306, %v303, %v305
      %309 = vst [vmem:[#allocation2 + $0x30] sm:$0xff] %v307
      %v310 = vld [vmem:[%s181] sm:$0xff]
      %v311 = vld [vmem:[%s181 + $0x8] sm:$0xff]
      %v314 = vunpack.c.l.b16 %v310
      %v315 = vunpack.c.h.b16 %v310
      %v316 = vunpack.c.l.b16 %v311
      %v317 = vunpack.c.h.b16 %v311
      %v318 = vpack.c.b16 %v316, %v314
      %v319 = vpack.c.b16 %v317, %v315
      %320 = vrot.lane.b32.xlu0 %v318, 107
      %v321 = vpop.permute.xlu0 %320
      %322 = vrot.lane.b32.xlu0 %v319, 107
      %v323 = vpop.permute.xlu0 %322
      %vm324 = vcmask 875520
      %v325 = vsel %vm324, %v321, %v323
      %327 = vst [vmem:[#allocation2 + $0x38] sm:$0xff] %v325
      %v328 = vld [vmem:[%s181] sm:$0xff]
      %v329 = vld [vmem:[%s181 + $0x8] sm:$0xff]
      %v332 = vunpack.c.l.b16 %v328
      %v333 = vunpack.c.h.b16 %v328
      %v334 = vunpack.c.l.b16 %v329
      %v335 = vunpack.c.h.b16 %v329
      %v336 = vpack.c.b16 %v334, %v332
      %v337 = vpack.c.b16 %v335, %v333
      %338 = vrot.lane.b32.xlu0 %v336, 106
      %v339 = vpop.permute.xlu0 %338
      %340 = vrot.lane.b32.xlu0 %v337, 106
      %v341 = vpop.permute.xlu0 %340
      %vm342 = vcmask 867328
      %v343 = vsel %vm342, %v339, %v341
      %345 = vst [vmem:[#allocation2 + $0x40] sm:$0xff] %v343
      %v346 = vld [vmem:[%s175] sm:$0xff]
      %v347 = vld [vmem:[%s175 + $0x8] sm:$0xff]
      %v348 = vld [vmem:[#allocation2] sm:$0xff]
      %v349 = vld [vmem:[#allocation2 + $0x8] sm:$0xff]
      %v350 = vld [vmem:[#allocation2 + $0x10] sm:$0xff]
      %v351 = vld [vmem:[#allocation2 + $0x18] sm:$0xff]
      %v352 = vld [vmem:[#allocation2 + $0x20] sm:$0xff]
      %v353 = vld [vmem:[#allocation2 + $0x28] sm:$0xff]
      %v354 = vld [vmem:[#allocation2 + $0x30] sm:$0xff]
      %v355 = vld [vmem:[#allocation2 + $0x38] sm:$0xff]
      %v356 = vld [vmem:[#allocation2 + $0x40] sm:$0xff]
      %v359 = vunpack.c.l.b16 %v346
      %v360 = vunpack.c.h.b16 %v346
      %v361 = vunpack.c.l.b16 %v347
      %v362 = vunpack.c.h.b16 %v347
      %v363 = vpack.c.b16 %v361, %v359
      %v364 = vpack.c.b16 %v362, %v360
      %vm366 = vcmask 130048
      %v368 = vsel %vm366, %v364, 0
      %370 = vmatprep.subr.bf16.mxu0 0
      %371 = vmatpush1.bf16.msra.mxu0 %v348
      %372 = vmatprep.subr.bf16.mxu0 0
      %373 = vmatpush1.bf16.msra.mxu0 %v349
      %374 = vmatprep.subr.bf16.mxu0 0
      %375 = vmatpush1.bf16.msra.mxu0 %v350
      %376 = vmatprep.subr.bf16.mxu0 0
      %377 = vmatpush1.bf16.msra.mxu0 %v351
      %378 = vmatprep.subr.bf16.mxu0 0
      %379 = vmatpush1.bf16.msra.mxu0 %v352
      %380 = vmatprep.subr.bf16.mxu0 0
      %381 = vmatpush1.bf16.msra.mxu0 %v353
      %382 = vmatprep.subr.bf16.mxu0 0
      %383 = vmatpush1.bf16.msra.mxu0 %v354
      %384 = vmatprep.subr.bf16.mxu0 0
      %385 = vmatpush1.bf16.msra.mxu0 %v355
      %386 = vmatprep.subr.bf16.mxu0 0
      %387 = vmatpush1.bf16.msra.mxu0 %v356
      %388 = vmatprep.subr.bf16.mxu0 0
      %389 = vmatpush1.bf16.msra.mxu0 0
      %390 = vmatprep.subr.bf16.mxu0 0
      %391 = vmatpush1.bf16.msra.mxu0 0
      %392 = vmatprep.subr.bf16.mxu0 0
      %393 = vmatpush1.bf16.msra.mxu0 0
      %394 = vmatprep.subr.bf16.mxu0 0
      %395 = vmatpush1.bf16.msra.mxu0 0
      %396 = vmatprep.subr.bf16.mxu0 0
      %397 = vmatpush1.bf16.msra.mxu0 0
      %398 = vmatprep.subr.bf16.mxu0 0
      %399 = vmatpush1.bf16.msra.mxu0 0
      %400 = vmatprep.subr.bf16.mxu0 0
      %401 = vmatpush1.bf16.msra.mxu0 0
      %402 = vmatprep.mubr.bf16.mxu0 %v368
      %403 = vmatmul.mubr.bf16.gmra.mrb[0].mxu0 %v363
      %v404 = vpop.f32.mrb[0].mxu0
      %v405 = vadd.f32 0.0, %v404
      %v406 = vpop.f32.mrb[0].mxu0
      %v407 = vpop.f32.mrb[0].mxu0
      %v408 = vadd.f32 0.0, %v407
      %v409 = vpop.f32.mrb[0].mxu0
      %410 = vdwg.mxu0
      %411 = vst [vmem:[%s190] sm:$0xff] %v405
      %412 = vst [vmem:[%s190 + $0x8] sm:$0xff] %v408
      %s413 = smul.u32 2, %s17
      %p414 = scmp.lt.s32.totalorder %s18, 1
      %s415 = scalar_select %p414, %s18, 1
      %p416 = scmp.lt.s32.totalorder %s413, 1
      %s417 = scalar_select %p416, %s413, 1
      %s418 = smul.addr %s415, 2
      %s419 = sadd.s32 %s417, %s418
      %s420 = smul.addr %s419, 8
      %s421 = scalar_lea.vmem %s2, %s420
      // Predicated region
      $region29: #{_lambda_.3} parent=27 // pred_check
        %p422 = pneg %p97
      $region30: #{_lambda_.3} parent=27 // pred_check_branch
        %424 = sbr.rel (%p422) target = $region32
      $region31: #{_lambda_.3} parent=27 // pred_region
        %s425 = smul.u32 2, %s17
      $region32: #{_lambda_.3} parent=27 // pred_fallthru
        _
    $region28: #{_lambda_.3} parent=5 // pred_fallthru
      _
    %p426 = scmp.le.s32.totalorder 2, %s8
    // Predicated region
    $region33: #{_lambda_.3} parent=5 // pred_check
      %p427 = pneg %p426
    $region34: #{_lambda_.3} parent=5 // pred_check_branch
      %429 = sbr.rel (%p427) target = $region36
    $region35: #{_lambda_.3} parent=5 // pred_region
      %s430 = ssub.s32 %s8, 2
      // Predicated region
      $region37: #{_lambda_.3} parent=35 // pred_check
        %p431 = pneg %p103
      $region38: #{_lambda_.3} parent=35 // pred_check_branch
        %433 = sbr.rel (%p431) target = $region40
      $region39: #{_lambda_.3} parent=35 // pred_region
        %s434 = smul.u32 2, %s19
        %p435 = scmp.lt.s32.totalorder %s20, 1
        %s436 = scalar_select %p435, %s20, 1
        %p437 = scmp.lt.s32.totalorder %s434, 1
        %s438 = scalar_select %p437, %s434, 1
        %s439 = smul.addr %s436, 2
        %s440 = sadd.s32 %s438, %s439
        %s441 = smul.addr %s440, 8
        %s442 = scalar_lea.vmem %s2, %s441
      $region40: #{_lambda_.3} parent=35 // pred_fallthru
        _
    $region36: #{_lambda_.3} parent=5 // pred_fallthru
      _
  $region6: #{_lambda_.3} parent=0 // loop_footer
    %s12 = sadd.s32 1, %s8
  $region7: #{_lambda_.3} parent=0 // loop_footer_branch
    %7 = sbr.rel target = $region3
  $region8: #{_lambda_.3} parent=0 // loop_exit
    _

</llo_original>
